<compile_context>
chip_gen: v5e
topology: v5e:2x2
jax: 0.10.0
libtpu: 0.0.40
codegen_flags: <defaults>
</compile_context>

<pallas_src>
import jax
import jax.numpy as jnp
from jax.experimental import pallas as pl
from jax.experimental.pallas import tpu as pltpu


_LANES = 128
_TARGET_COLS = 2048                 # lane-dense row width (multiple of 128)
_BLOCK_BYTES = 4 * 1024 * 1024      # ~4 MiB per block -> ~8 MiB traffic/step
_VMEM_LIMIT_BYTES = 32 * 1024 * 1024


def _round_up(x, m):
    return (x + m - 1) // m * m


def _choose_cols(n_padded, batch, min_rows):
    """Largest multiple-of-128 divisor of n_padded that is <= _TARGET_COLS and
    still leaves at least `min_rows` total rows (batch * n_padded // cols).
    Falls back to 128 (maximum row count) if nothing satisfies the row bound."""
    best = _LANES
    c = _LANES
    limit = min(_TARGET_COLS, n_padded)
    while c <= limit:
        if n_padded % c == 0 and batch * (n_padded // c) >= min_rows:
            best = c
        c += _LANES
    return best


def _drop_path_kernel(x_ref, mask_ref, o_ref):
    # x_ref: (TR, cols) tile, mask_ref: (TR, 1) per-row (= per-sample) mask.
    o_ref[...] = x_ref[...] * mask_ref[...]


def drop_path_pallas(x, mask):
    """Apply a per-sample keep mask (shape (B,)) to x (any shape, leading B)."""
    B = x.shape[0]
    N = 1
    for d in x.shape[1:]:
        N *= d
    itemsize = jnp.dtype(x.dtype).itemsize
    min_rows = max(8, 32 // itemsize)          # 8 f32 / 16 bf16 / 32 int8

    n_pad = _round_up(N, _LANES)
    cols = _choose_cols(n_pad, B, min_rows)
    rows_per_sample = n_pad // cols
    rows = B * rows_per_sample

    flat = x.reshape(B, N)
    if n_pad != N:
        flat = jnp.pad(flat, ((0, 0), (0, n_pad - N)))
    x2 = flat.reshape(rows, cols)

    # One mask scalar per row (each sample's value repeated over its rows).
    mask_rows = jnp.repeat(mask.astype(x.dtype).reshape(B, 1),
                           rows_per_sample, axis=0)

    # Row-tile size: as large as the ~4 MiB block budget allows.
    tr_budget = max(1, _BLOCK_BYTES // (cols * itemsize))
    if rows <= tr_budget:
        tile_rows = rows                                    # full extent
    else:
        tile_rows = max(min_rows, (tr_budget // min_rows) * min_rows)

    grid = (pl.cdiv(rows, tile_rows),)

    out = pl.pallas_call(
        _drop_path_kernel,
        out_shape=jax.ShapeDtypeStruct((rows, cols), x.dtype),
        grid_spec=pltpu.PrefetchScalarGridSpec(
            num_scalar_prefetch=0,
            grid=grid,
            in_specs=[
                pl.BlockSpec((tile_rows, cols), lambda i: (i, 0)),
                pl.BlockSpec((tile_rows, 1), lambda i: (i, 0)),
            ],
            out_specs=pl.BlockSpec((tile_rows, cols), lambda i: (i, 0)),
        ),
        compiler_params=pltpu.CompilerParams(
            dimension_semantics=("parallel",),
            vmem_limit_bytes=_VMEM_LIMIT_BYTES),
    )(x2, mask_rows)

    out = out.reshape(B, n_pad)
    if n_pad != N:
        out = out[:, :N]
    return out.reshape(x.shape)


def drop_path(x, key, drop_prob: float = 0.0, training: bool = False,
              scale_by_keep: bool = True):
    """JAX/Pallas equivalent of the PyTorch drop_path function."""
    if drop_prob == 0.0 or not training:
        return x
    keep_prob = 1.0 - drop_prob
    keep = jax.random.bernoulli(key, p=keep_prob,
                                shape=(x.shape[0],)).astype(x.dtype)
    if keep_prob > 0.0 and scale_by_keep:
        keep = keep / jnp.asarray(keep_prob, dtype=x.dtype)
    return drop_path_pallas(x, keep)


class DropPath:
    """Mirror of the PyTorch DropPath module (forward only)."""

    def __init__(self, drop_prob: float = 0.0, scale_by_keep: bool = True):
        self.drop_prob = drop_prob
        self.scale_by_keep = scale_by_keep
        self.training = True  # PyTorch modules default to training mode

    def __call__(self, x, key):
        return drop_path(x, key, self.drop_prob, self.training,
                         self.scale_by_keep)


if __name__ == "__main__":
    key = jax.random.PRNGKey(0)
    k_x, k_mask = jax.random.split(key)

    B, C, H, W = 2, 4, 16, 16
    x = jax.random.normal(k_x, (B, C, H, W), dtype=jnp.float32)

    module = DropPath(drop_prob=0.3, scale_by_keep=True)
    module.training = True
    y = jax.block_until_ready(module(x, k_mask))

    # Reference check in plain JAX (same mask draw).
    keep_prob = 1.0 - module.drop_prob
    keep = jax.random.bernoulli(k_mask, p=keep_prob,
                                shape=(B,)).astype(x.dtype) / keep_prob
    ref = x * keep.reshape(B, 1, 1, 1)
    assert y.shape == x.shape and y.dtype == x.dtype
    assert jnp.allclose(y, ref, atol=1e-6, rtol=1e-6)

    # Eval mode must be identity.
    module.training = False
    y_eval = jax.block_until_ready(module(x, k_mask))
    assert jnp.allclose(y_eval, x)

    # Exercise the non-128-multiple feature-size path (padding branch).
    module.training = True
    x_odd = jax.random.normal(k_x, (2, 3, 5, 7), dtype=jnp.float32)
    y_odd = jax.block_until_ready(module(x_odd, k_mask))
    keep_odd = jax.random.bernoulli(k_mask, p=keep_prob,
                                    shape=(2,)).astype(x_odd.dtype) / keep_prob
    assert jnp.allclose(y_odd, x_odd * keep_odd.reshape(2, 1, 1, 1),
                        atol=1e-6, rtol=1e-6)

    print("KERNEL_OK")
</pallas_src>

<mosaic_0001>
module attributes {stable_mosaic.version = 11 : i64} {
  func.func @_drop_path_kernel(%arg0: i32, %arg1: memref<8x256xf32, #tpu.memory_space<vmem>>, %arg2: memref<8x1xf32, #tpu.memory_space<vmem>>, %arg3: memref<8x256xf32, #tpu.memory_space<vmem>>) attributes {dimension_semantics = [#tpu.dimension_semantics<parallel>], iteration_bounds = array<i64: 1>, scalar_prefetch = 0 : i64, scratch_operands = 0 : i64, tpu.core_type = #tpu.core_type<tc>, window_params = [{transform_indices = @transform_0, window_bounds = array<i64: 8, 256>}, {transform_indices = @transform_1, window_bounds = array<i64: 8, 1>}, {transform_indices = @transform_2, window_bounds = array<i64: 8, 256>}]} {
    %c0 = arith.constant 0 : index
    %c0_0 = arith.constant 0 : index
    %0 = vector.load %arg1[%c0, %c0_0] : memref<8x256xf32, #tpu.memory_space<vmem>>, vector<8x256xf32>
    %c0_1 = arith.constant 0 : index
    %c0_2 = arith.constant 0 : index
    %1 = vector.load %arg2[%c0_1, %c0_2] : memref<8x1xf32, #tpu.memory_space<vmem>>, vector<8x1xf32>
    %2 = vector.broadcast %1 : vector<8x1xf32> to vector<8x256xf32>
    %3 = arith.mulf %0, %2 : vector<8x256xf32>
    %c0_3 = arith.constant 0 : index
    %c0_4 = arith.constant 0 : index
    %4 = vector.load %arg3[%c0_3, %c0_4] : memref<8x256xf32, #tpu.memory_space<vmem>>, vector<8x256xf32>
    tpu.vector_store %arg3[%c0_3, %c0_4], %3 {strides = array<i32>} : memref<8x256xf32, #tpu.memory_space<vmem>>, vector<8x256xf32>,
    return
  }
  func.func @transform_0(%arg0: i32) -> (i32, i32) {
    %c0_i32 = arith.constant 0 : i32
    %c0_i32_0 = arith.constant 0 : i32
    return %arg0, %c0_i32 : i32, i32
  }
  func.func @transform_1(%arg0: i32) -> (i32, i32) {
    %c0_i32 = arith.constant 0 : i32
    %c0_i32_0 = arith.constant 0 : i32
    return %arg0, %c0_i32 : i32, i32
  }
  func.func @transform_2(%arg0: i32) -> (i32, i32) {
    %c0_i32 = arith.constant 0 : i32
    %c0_i32_0 = arith.constant 0 : i32
    return %arg0, %c0_i32 : i32, i32
  }
}

</mosaic_0001>

<llo_original>
// kernel: tpu_custom_call.1
$region0: #{tpu_custom_call.1}
  #allocation0 [shape = 'u32[]', space=smem, size = 0x4, offset = 0x4, fixed_abs, tag = 'smem constant byte address 0x4 - core index']
  #allocation1 [shape = 'u32[72,128]{1,0:T(1,128)}', space=vmem, size = 0x9000, scoped, tag = 'internal scratch']
  %s0 = inlined_call_operand.hbm [shape: f32[8,256], index: 0, kind: input, shape index: {}]
  %s1 = inlined_call_operand.vmem [shape: f32[8,1], index: 1, kind: input, shape index: {}]
  %s2 = inlined_call_operand.hbm [shape: f32[8,256], index: 2, kind: output, shape index: {}]
  %s3 = sld [smem:[#allocation0]]
  $region22: #{tpu_custom_call.1} parent=0
    _
  %s5 = ssub.s32 1, %s3
  %s6 = scalar_select 0, %s5, %s3
  $region1: #{tpu_custom_call.1} parent=0
    #allocation2 [shape = 'u8[8192]{0}', space=vmem, size = 0x2000, scoped, tag = 'input window, operand 0, single buffered']
    #allocation3 [shape = 's32[1]{0}', space=sflag, size = 0x4, scoped, tag = 'scoped memory for tpu_custom_call.1']
    #allocation4 [shape = 's32[1]{0}', space=sflag, size = 0x4, scoped, tag = 'scoped memory for tpu_custom_call.1']
    #allocation5 [shape = 'u8[8192]{0}', space=vmem, size = 0x2000, scoped, tag = 'output window, operand 0, single buffered']
    %7 = vsyncpa [#allocation3], 0
    %8 = vsyncpa [#allocation4], 0
    // Predicated region
    $region2: #{tpu_custom_call.1} parent=1 // pred_check
      _
    $region3: #{tpu_custom_call.1} parent=1 // pred_check_branch
      %10 = sbr.rel (0) target = $region5
    $region4: #{tpu_custom_call.1} parent=1 // pred_region
      %12 = vsyncadd [#allocation3], 0
      %s14 = sshll.u32 %s0, 4
      %s15 = int_to_ptr.hbm [resolvable:$true] %s14
      %s16 = sshll.u32 [#allocation2], 4
      %s17 = int_to_ptr.vmem [resolvable:$true] %s16
      %19 = dma.hbm_to_vmem [thread:$0]  %s15, 256, %s17, [#allocation3]
    $region5: #{tpu_custom_call.1} parent=1 // pred_fallthru
      _
    // Predicated region
    $region6: #{tpu_custom_call.1} parent=1 // pred_check
      _
    $region7: #{tpu_custom_call.1} parent=1 // pred_check_branch
      %21 = sbr.rel (0) target = $region9
    $region8: #{tpu_custom_call.1} parent=1 // pred_region
      _
    $region9: #{tpu_custom_call.1} parent=1 // pred_fallthru
      _
    // Predicated region
    $region10: #{tpu_custom_call.1} parent=1 // pred_check
      _
    $region11: #{tpu_custom_call.1} parent=1 // pred_check_branch
      %23 = sbr.rel (0) target = $region13
    $region12: #{tpu_custom_call.1} parent=1 // pred_region
      %25 = dma.done [#allocation3], 256
    $region13: #{tpu_custom_call.1} parent=1 // pred_fallthru
      _
    %v26 = vld [vmem:[#allocation2] sm:$0xff]
    %v27 = vld [vmem:[#allocation2 + $0x8] sm:$0xff]
    %v28 = vld [vmem:[%s1] sm:$0xff]
    %30 = vset.pattern.permute.xlu0 0
    %31 = vperm.xlu0 %30, %v28
    %v32 = vpop.permute.xlu0 %31
    %v34 = vmul.f32 %v26, %v32
    %v35 = vmul.f32 %v27, %v32
    %36 = vst [vmem:[#allocation5] sm:$0xff] %v34
    %37 = vst [vmem:[#allocation5 + $0x8] sm:$0xff] %v35
    // Predicated region
    $region14: #{tpu_custom_call.1} parent=1 // pred_check
      _
    $region15: #{tpu_custom_call.1} parent=1 // pred_check_branch
      %39 = sbr.rel (0) target = $region17
    $region16: #{tpu_custom_call.1} parent=1 // pred_region
      %41 = vsyncadd [#allocation4], 0
      %s43 = sshll.u32 [#allocation5], 4
      %s44 = int_to_ptr.vmem [resolvable:$true] %s43
      %s45 = sshll.u32 %s2, 4
      %s46 = int_to_ptr.hbm [resolvable:$true] %s45
      %48 = dma.vmem_to_hbm [thread:$0]  %s44, 256, %s46, [#allocation4]
    $region17: #{tpu_custom_call.1} parent=1 // pred_fallthru
      _
    // Predicated region
    $region18: #{tpu_custom_call.1} parent=1 // pred_check
      _
    $region19: #{tpu_custom_call.1} parent=1 // pred_check_branch
      %50 = sbr.rel (0) target = $region21
    $region20: #{tpu_custom_call.1} parent=1 // pred_region
      %52 = dma.done [#allocation4], 256
    $region21: #{tpu_custom_call.1} parent=1 // pred_fallthru
      _
    %53 = vsyncpa [#allocation3], 1
    %54 = vsyncpa [#allocation4], 1

</llo_original>
